<compile_context>
chip_gen: v5e
topology: v5e:2x2
jax: 0.10.0
libtpu: 0.0.40
codegen_flags: <defaults>
</compile_context>

<pallas_src>
import jax
import jax.numpy as jnp
from jax import lax
from jax.experimental import pallas as pl
from jax.experimental.pallas import tpu as pltpu


def make_fused_nll_kernel(n: int, h: int, gamma: float, sigma_w: float):
    """Builds the fused kernel: packed(16,128) -> (1,1) negative log-likelihood."""

    def kernel(p_ref, o_ref):
        f32 = jnp.float32

        # ------------------------------------------------------------------
        # 0. Unpack the single input buffer with static ref slices.
        #    rows [0:n)      cols [0:2)  : x
        #    row  n          cols [0:n)  : y (as a lane row for cheap slicing)
        #    rows [n+1:n+3)  cols [0:h)  : W
        #    row  n+3        cols [0:h)  : b
        # ------------------------------------------------------------------
        x0 = p_ref[0:n, 0:1]                      # (n, 1)
        x1 = p_ref[0:n, 1:2]                      # (n, 1)
        y_row = p_ref[n:n + 1, 0:n]               # (1, n)
        w0 = p_ref[n + 1:n + 2, 0:h]              # (1, h)
        w1 = p_ref[n + 2:n + 3, 0:h]              # (1, h)
        bias = p_ref[n + 3:n + 4, 0:h]            # (1, h)

        # ------------------------------------------------------------------
        # 1. Linear transform (K=2): two VPU broadcast-FMAs, no MXU round-trip.
        # ------------------------------------------------------------------
        feats = x0 * w0 + x1 * w1 + bias          # (n, h)

        # ------------------------------------------------------------------
        # 2. RBF kernel matrix + sigma_w * I (diagonal forced exactly).
        # ------------------------------------------------------------------
        gram = lax.dot_general(feats, feats, (((1,), (1,)), ((), ())),
                               preferred_element_type=f32)       # (n, n) MXU
        sq = jnp.sum(feats * feats, axis=1, keepdims=True)       # (n, 1)
        d2 = jnp.maximum(sq + jnp.transpose(sq) - 2.0 * gram, 0.0)
        kmat = jnp.exp(-gamma * d2)                               # EUP exp

        row_ids = lax.broadcasted_iota(jnp.int32, (n, n), 0)
        col_ids = lax.broadcasted_iota(jnp.int32, (n, n), 1)
        kmat = jnp.where(row_ids == col_ids, f32(1.0 + sigma_w), kmat)

        # ------------------------------------------------------------------
        # 3. Fused outer-product Cholesky + forward solve + logdet.
        #    K = U^T U ;  y^T K^-1 y = ||U^-T y||^2 ;  logdet = log(prod pivots)
        #    The Schur block of A stays symmetric, so the rank-1 update column
        #    comes from A[:, j:j+1] (static lane slice) -- no transpose needed.
        # ------------------------------------------------------------------
        lane = lax.broadcasted_iota(jnp.int32, (1, n), 1)         # (1, n)
        sub = lax.broadcasted_iota(jnp.int32, (n, 1), 0)          # (n, 1)

        a_mat = kmat                                              # working matrix
        resid = y_row                                             # (1, n) solve residual
        quad = jnp.zeros((1, 1), f32)                             # sum_j w_j^2
        det = jnp.ones((1, 1), f32)                               # prod_j pivot_j

        for j in range(n):
            a_row = a_mat[j:j + 1, :]                             # (1, n) static slice
            pivot = a_row[:, j:j + 1]                             # (1, 1)
            inv_d = lax.rsqrt(pivot)                              # 1 / U[j,j]
            off_row = jnp.where(lane > j, a_row * inv_d, 0.0)     # U[j, i>j]

            # forward solve U^T w = y (fused)
            w_j = resid[:, j:j + 1] * inv_d                       # (1, 1)
            resid = resid - off_row * w_j
            quad = quad + w_j * w_j
            det = det * pivot

            # Schur-complement rank-1 update (only the block i>j, k>j matters)
            if j < n - 1:
                a_col = a_mat[:, j:j + 1]                         # (n, 1) static slice
                off_col = jnp.where(sub > j, a_col * inv_d, 0.0)
                a_mat = a_mat - off_col * off_row

        # nll = 0.5 * y^T K^-1 y + 0.5 * logdet(K)
        o_ref[...] = 0.5 * (quad + jnp.log(det))

    return kernel


def fancy_kernel_forward(x, y, w, b, sigma_w: float):
    """Full FancyKernel forward: data = [x, y] -> scalar NLL (one pallas_call)."""
    n = x.shape[0]
    h = w.shape[1]
    gamma = 1.0 / (2.0 * 0.5 ** 2)                 # = 2.0, as in calc_likelihood

    rows, cols = 16, 128                           # single lane-padded input tile
    assert n + 4 <= rows and max(n, h, 2) <= cols

    packed = jnp.zeros((rows, cols), jnp.float32)
    packed = packed.at[0:n, 0:2].set(x.astype(jnp.float32))
    packed = packed.at[n, 0:n].set(y.astype(jnp.float32).reshape(n))
    packed = packed.at[n + 1:n + 3, 0:h].set(w.astype(jnp.float32))
    packed = packed.at[n + 3, 0:h].set(b.astype(jnp.float32).reshape(h))

    out = pl.pallas_call(
        make_fused_nll_kernel(n, h, gamma, sigma_w),
        out_shape=jax.ShapeDtypeStruct((1, 1), jnp.float32),
        in_specs=[pl.BlockSpec(memory_space=pltpu.MemorySpace.VMEM)],
        out_specs=pl.BlockSpec(memory_space=pltpu.MemorySpace.VMEM),
    )(packed)
    return out[0, 0]


def _reference_nll(x, y, w, b, sigma_w: float):
    """Pure-JAX reference mirroring the PyTorch module."""
    gamma = 1.0 / (2.0 * 0.5 ** 2)
    feats = x @ w + b                                        # (n, H)
    diff = feats[:, None, :] - feats[None, :, :]
    d2 = jnp.sum(diff * diff, axis=-1)
    k_val = jnp.exp(-gamma * d2) + sigma_w * jnp.eye(x.shape[0], dtype=jnp.float32)
    part1 = 0.5 * jnp.dot(y, jnp.linalg.solve(k_val, y))
    part2 = 0.5 * jnp.linalg.slogdet(k_val)[1]
    return part1 + part2


if __name__ == "__main__":
    n = 8
    hidden_dim = 32
    sigma_w = 0.1

    key = jax.random.PRNGKey(0)
    kx, ky, kw, kb = jax.random.split(key, 4)

    # data = [x, y]
    x = jax.random.normal(kx, (n, 2), dtype=jnp.float32)
    y = jax.random.normal(ky, (n,), dtype=jnp.float32)

    # Deterministic Linear(2, hidden_dim) parameters (stored as (2, H) for x @ W + b).
    w = 0.1 * jax.random.normal(kw, (2, hidden_dim), dtype=jnp.float32)
    b = 0.1 * jax.random.normal(kb, (1, hidden_dim), dtype=jnp.float32)

    out = fancy_kernel_forward(x, y, w, b, sigma_w)
    out = jax.block_until_ready(out)

    ref = jax.block_until_ready(_reference_nll(x, y, w, b, sigma_w))

    assert out.shape == () and jnp.isfinite(out)
    assert jnp.allclose(out, ref, rtol=1e-4, atol=1e-4), (out, ref)
    print("KERNEL_OK")
</pallas_src>

<mosaic_0001>
module attributes {stable_mosaic.version = 11 : i64} {
  func.func @kernel(%arg0: memref<16x128xf32, #tpu.memory_space<vmem>>, %arg1: memref<1x1xf32, #tpu.memory_space<vmem>>) attributes {dimension_semantics = [], scalar_prefetch = 0 : i64, scratch_operands = 0 : i64, tpu.core_type = #tpu.core_type<tc>} {
    %c0 = arith.constant 0 : index
    %c0_0 = arith.constant 0 : index
    %0 = vector.load %arg0[%c0, %c0_0] : memref<16x128xf32, #tpu.memory_space<vmem>>, vector<8x1xf32>
    %c0_1 = arith.constant 0 : index
    %c1 = arith.constant 1 : index
    %1 = vector.load %arg0[%c0_1, %c1] : memref<16x128xf32, #tpu.memory_space<vmem>>, vector<8x1xf32>
    %c8 = arith.constant 8 : index
    %c0_2 = arith.constant 0 : index
    %2 = vector.load %arg0[%c8, %c0_2] : memref<16x128xf32, #tpu.memory_space<vmem>>, vector<1x8xf32>
    %c9 = arith.constant 9 : index
    %c0_3 = arith.constant 0 : index
    %3 = vector.load %arg0[%c9, %c0_3] : memref<16x128xf32, #tpu.memory_space<vmem>>, vector<1x32xf32>
    %c10 = arith.constant 10 : index
    %c0_4 = arith.constant 0 : index
    %4 = vector.load %arg0[%c10, %c0_4] : memref<16x128xf32, #tpu.memory_space<vmem>>, vector<1x32xf32>
    %c11 = arith.constant 11 : index
    %c0_5 = arith.constant 0 : index
    %5 = vector.load %arg0[%c11, %c0_5] : memref<16x128xf32, #tpu.memory_space<vmem>>, vector<1x32xf32>
    %6 = vector.broadcast %0 : vector<8x1xf32> to vector<8x32xf32>
    %7 = vector.broadcast %3 : vector<1x32xf32> to vector<8x32xf32>
    %8 = arith.mulf %6, %7 : vector<8x32xf32>
    %9 = vector.broadcast %1 : vector<8x1xf32> to vector<8x32xf32>
    %10 = vector.broadcast %4 : vector<1x32xf32> to vector<8x32xf32>
    %11 = arith.mulf %9, %10 : vector<8x32xf32>
    %12 = arith.addf %8, %11 : vector<8x32xf32>
    %13 = vector.broadcast %5 : vector<1x32xf32> to vector<8x32xf32>
    %14 = arith.addf %12, %13 : vector<8x32xf32>
    %cst = arith.constant dense<0.000000e+00> : vector<8x8xf32>
    %15 = tpu.matmul %14, %14, %cst {dimension_numbers = #tpu.dot_dimension_numbers<[1], [1], [0], [0], [0, 0, 1, 0], [], []>} : vector<8x32xf32>, vector<8x32xf32>, vector<8x8xf32> -> vector<8x8xf32>
    %16 = arith.mulf %14, %14 : vector<8x32xf32>
    %cst_6 = arith.constant dense<0.000000e+00> : vector<8xf32>
    %17 = vector.multi_reduction <add>, %16, %cst_6 [1] : vector<8x32xf32> to vector<8xf32>
    %18 = vector.shape_cast %17 : vector<8xf32> to vector<8x1xf32>
    %19 = tpu.transpose %18, [1, 0] : vector<8x1xf32> -> vector<1x8xf32>
    %20 = vector.broadcast %18 : vector<8x1xf32> to vector<8x8xf32>
    %21 = vector.broadcast %19 : vector<1x8xf32> to vector<8x8xf32>
    %22 = arith.addf %20, %21 : vector<8x8xf32>
    %cst_7 = arith.constant 2.000000e+00 : f32
    %23 = vector.broadcast %cst_7 : f32 to vector<8x8xf32>
    %24 = arith.mulf %23, %15 : vector<8x8xf32>
    %25 = arith.subf %22, %24 : vector<8x8xf32>
    %cst_8 = arith.constant 0.000000e+00 : f32
    %26 = vector.broadcast %cst_8 : f32 to vector<8x8xf32>
    %27 = arith.maximumf %25, %26 : vector<8x8xf32>
    %cst_9 = arith.constant -2.000000e+00 : f32
    %28 = vector.broadcast %cst_9 : f32 to vector<8x8xf32>
    %29 = arith.mulf %28, %27 : vector<8x8xf32>
    %30 = math.exp %29 : vector<8x8xf32>
    %31 = tpu.iota {dimensions = array<i32: 0>} : vector<8x8xi32>
    %32 = tpu.iota {dimensions = array<i32: 1>} : vector<8x8xi32>
    %33 = arith.cmpi eq, %31, %32 : vector<8x8xi32>
    %cst_10 = arith.constant 1.100000e+00 : f32
    %34 = vector.broadcast %cst_10 : f32 to vector<8x8xf32>
    %35 = arith.select %33, %34, %30 : vector<8x8xi1>, vector<8x8xf32>
    %36 = tpu.iota {dimensions = array<i32: 1>} : vector<1x8xi32>
    %37 = tpu.iota {dimensions = array<i32: 0>} : vector<8x1xi32>
    %cst_11 = arith.constant 0.000000e+00 : f32
    %38 = vector.broadcast %cst_11 : f32 to vector<1x1xf32>
    %cst_12 = arith.constant 1.000000e+00 : f32
    %39 = vector.broadcast %cst_12 : f32 to vector<1x1xf32>
    %40 = vector.extract_strided_slice %35 {offsets = [0, 0], sizes = [1, 8], strides = [1, 1]} : vector<8x8xf32> to vector<1x8xf32>
    %41 = vector.extract_strided_slice %40 {offsets = [0, 0], sizes = [1, 1], strides = [1, 1]} : vector<1x8xf32> to vector<1x1xf32>
    %42 = math.rsqrt %41 : vector<1x1xf32>
    %c0_i32 = arith.constant 0 : i32
    %43 = vector.broadcast %c0_i32 : i32 to vector<1x8xi32>
    %44 = arith.cmpi sgt, %36, %43 : vector<1x8xi32>
    %45 = vector.broadcast %42 : vector<1x1xf32> to vector<1x8xf32>
    %46 = arith.mulf %40, %45 : vector<1x8xf32>
    %cst_13 = arith.constant 0.000000e+00 : f32
    %47 = vector.broadcast %cst_13 : f32 to vector<1x8xf32>
    %48 = arith.select %44, %46, %47 : vector<1x8xi1>, vector<1x8xf32>
    %49 = vector.extract_strided_slice %2 {offsets = [0, 0], sizes = [1, 1], strides = [1, 1]} : vector<1x8xf32> to vector<1x1xf32>
    %50 = arith.mulf %49, %42 : vector<1x1xf32>
    %51 = vector.broadcast %50 : vector<1x1xf32> to vector<1x8xf32>
    %52 = arith.mulf %48, %51 : vector<1x8xf32>
    %53 = arith.subf %2, %52 : vector<1x8xf32>
    %54 = arith.mulf %50, %50 : vector<1x1xf32>
    %55 = arith.addf %38, %54 : vector<1x1xf32>
    %56 = arith.mulf %39, %41 : vector<1x1xf32>
    %57 = vector.extract_strided_slice %35 {offsets = [0, 0], sizes = [8, 1], strides = [1, 1]} : vector<8x8xf32> to vector<8x1xf32>
    %c0_i32_14 = arith.constant 0 : i32
    %58 = vector.broadcast %c0_i32_14 : i32 to vector<8x1xi32>
    %59 = arith.cmpi sgt, %37, %58 : vector<8x1xi32>
    %60 = vector.broadcast %42 : vector<1x1xf32> to vector<8x1xf32>
    %61 = arith.mulf %57, %60 : vector<8x1xf32>
    %cst_15 = arith.constant 0.000000e+00 : f32
    %62 = vector.broadcast %cst_15 : f32 to vector<8x1xf32>
    %63 = arith.select %59, %61, %62 : vector<8x1xi1>, vector<8x1xf32>
    %64 = vector.broadcast %63 : vector<8x1xf32> to vector<8x8xf32>
    %65 = vector.broadcast %48 : vector<1x8xf32> to vector<8x8xf32>
    %66 = arith.mulf %64, %65 : vector<8x8xf32>
    %67 = arith.subf %35, %66 : vector<8x8xf32>
    %68 = vector.extract_strided_slice %67 {offsets = [1, 0], sizes = [1, 8], strides = [1, 1]} : vector<8x8xf32> to vector<1x8xf32>
    %69 = vector.extract_strided_slice %68 {offsets = [0, 1], sizes = [1, 1], strides = [1, 1]} : vector<1x8xf32> to vector<1x1xf32>
    %70 = math.rsqrt %69 : vector<1x1xf32>
    %c1_i32 = arith.constant 1 : i32
    %71 = vector.broadcast %c1_i32 : i32 to vector<1x8xi32>
    %72 = arith.cmpi sgt, %36, %71 : vector<1x8xi32>
    %73 = vector.broadcast %70 : vector<1x1xf32> to vector<1x8xf32>
    %74 = arith.mulf %68, %73 : vector<1x8xf32>
    %cst_16 = arith.constant 0.000000e+00 : f32
    %75 = vector.broadcast %cst_16 : f32 to vector<1x8xf32>
    %76 = arith.select %72, %74, %75 : vector<1x8xi1>, vector<1x8xf32>
    %77 = vector.extract_strided_slice %53 {offsets = [0, 1], sizes = [1, 1], strides = [1, 1]} : vector<1x8xf32> to vector<1x1xf32>
    %78 = arith.mulf %77, %70 : vector<1x1xf32>
    %79 = vector.broadcast %78 : vector<1x1xf32> to vector<1x8xf32>
    %80 = arith.mulf %76, %79 : vector<1x8xf32>
    %81 = arith.subf %53, %80 : vector<1x8xf32>
    %82 = arith.mulf %78, %78 : vector<1x1xf32>
    %83 = arith.addf %55, %82 : vector<1x1xf32>
    %84 = arith.mulf %56, %69 : vector<1x1xf32>
    %85 = vector.extract_strided_slice %67 {offsets = [0, 1], sizes = [8, 1], strides = [1, 1]} : vector<8x8xf32> to vector<8x1xf32>
    %c1_i32_17 = arith.constant 1 : i32
    %86 = vector.broadcast %c1_i32_17 : i32 to vector<8x1xi32>
    %87 = arith.cmpi sgt, %37, %86 : vector<8x1xi32>
    %88 = vector.broadcast %70 : vector<1x1xf32> to vector<8x1xf32>
    %89 = arith.mulf %85, %88 : vector<8x1xf32>
    %cst_18 = arith.constant 0.000000e+00 : f32
    %90 = vector.broadcast %cst_18 : f32 to vector<8x1xf32>
    %91 = arith.select %87, %89, %90 : vector<8x1xi1>, vector<8x1xf32>
    %92 = vector.broadcast %91 : vector<8x1xf32> to vector<8x8xf32>
    %93 = vector.broadcast %76 : vector<1x8xf32> to vector<8x8xf32>
    %94 = arith.mulf %92, %93 : vector<8x8xf32>
    %95 = arith.subf %67, %94 : vector<8x8xf32>
    %96 = vector.extract_strided_slice %95 {offsets = [2, 0], sizes = [1, 8], strides = [1, 1]} : vector<8x8xf32> to vector<1x8xf32>
    %97 = vector.extract_strided_slice %96 {offsets = [0, 2], sizes = [1, 1], strides = [1, 1]} : vector<1x8xf32> to vector<1x1xf32>
    %98 = math.rsqrt %97 : vector<1x1xf32>
    %c2_i32 = arith.constant 2 : i32
    %99 = vector.broadcast %c2_i32 : i32 to vector<1x8xi32>
    %100 = arith.cmpi sgt, %36, %99 : vector<1x8xi32>
    %101 = vector.broadcast %98 : vector<1x1xf32> to vector<1x8xf32>
    %102 = arith.mulf %96, %101 : vector<1x8xf32>
    %cst_19 = arith.constant 0.000000e+00 : f32
    %103 = vector.broadcast %cst_19 : f32 to vector<1x8xf32>
    %104 = arith.select %100, %102, %103 : vector<1x8xi1>, vector<1x8xf32>
    %105 = vector.extract_strided_slice %81 {offsets = [0, 2], sizes = [1, 1], strides = [1, 1]} : vector<1x8xf32> to vector<1x1xf32>
    %106 = arith.mulf %105, %98 : vector<1x1xf32>
    %107 = vector.broadcast %106 : vector<1x1xf32> to vector<1x8xf32>
    %108 = arith.mulf %104, %107 : vector<1x8xf32>
    %109 = arith.subf %81, %108 : vector<1x8xf32>
    %110 = arith.mulf %106, %106 : vector<1x1xf32>
    %111 = arith.addf %83, %110 : vector<1x1xf32>
    %112 = arith.mulf %84, %97 : vector<1x1xf32>
    %113 = vector.extract_strided_slice %95 {offsets = [0, 2], sizes = [8, 1], strides = [1, 1]} : vector<8x8xf32> to vector<8x1xf32>
    %c2_i32_20 = arith.constant 2 : i32
    %114 = vector.broadcast %c2_i32_20 : i32 to vector<8x1xi32>
    %115 = arith.cmpi sgt, %37, %114 : vector<8x1xi32>
    %116 = vector.broadcast %98 : vector<1x1xf32> to vector<8x1xf32>
    %117 = arith.mulf %113, %116 : vector<8x1xf32>
    %cst_21 = arith.constant 0.000000e+00 : f32
    %118 = vector.broadcast %cst_21 : f32 to vector<8x1xf32>
    %119 = arith.select %115, %117, %118 : vector<8x1xi1>, vector<8x1xf32>
    %120 = vector.broadcast %119 : vector<8x1xf32> to vector<8x8xf32>
    %121 = vector.broadcast %104 : vector<1x8xf32> to vector<8x8xf32>
    %122 = arith.mulf %120, %121 : vector<8x8xf32>
    %123 = arith.subf %95, %122 : vector<8x8xf32>
    %124 = vector.extract_strided_slice %123 {offsets = [3, 0], sizes = [1, 8], strides = [1, 1]} : vector<8x8xf32> to vector<1x8xf32>
    %125 = vector.extract_strided_slice %124 {offsets = [0, 3], sizes = [1, 1], strides = [1, 1]} : vector<1x8xf32> to vector<1x1xf32>
    %126 = math.rsqrt %125 : vector<1x1xf32>
    %c3_i32 = arith.constant 3 : i32
    %127 = vector.broadcast %c3_i32 : i32 to vector<1x8xi32>
    %128 = arith.cmpi sgt, %36, %127 : vector<1x8xi32>
    %129 = vector.broadcast %126 : vector<1x1xf32> to vector<1x8xf32>
    %130 = arith.mulf %124, %129 : vector<1x8xf32>
    %cst_22 = arith.constant 0.000000e+00 : f32
    %131 = vector.broadcast %cst_22 : f32 to vector<1x8xf32>
    %132 = arith.select %128, %130, %131 : vector<1x8xi1>, vector<1x8xf32>
    %133 = vector.extract_strided_slice %109 {offsets = [0, 3], sizes = [1, 1], strides = [1, 1]} : vector<1x8xf32> to vector<1x1xf32>
    %134 = arith.mulf %133, %126 : vector<1x1xf32>
    %135 = vector.broadcast %134 : vector<1x1xf32> to vector<1x8xf32>
    %136 = arith.mulf %132, %135 : vector<1x8xf32>
    %137 = arith.subf %109, %136 : vector<1x8xf32>
    %138 = arith.mulf %134, %134 : vector<1x1xf32>
    %139 = arith.addf %111, %138 : vector<1x1xf32>
    %140 = arith.mulf %112, %125 : vector<1x1xf32>
    %141 = vector.extract_strided_slice %123 {offsets = [0, 3], sizes = [8, 1], strides = [1, 1]} : vector<8x8xf32> to vector<8x1xf32>
    %c3_i32_23 = arith.constant 3 : i32
    %142 = vector.broadcast %c3_i32_23 : i32 to vector<8x1xi32>
    %143 = arith.cmpi sgt, %37, %142 : vector<8x1xi32>
    %144 = vector.broadcast %126 : vector<1x1xf32> to vector<8x1xf32>
    %145 = arith.mulf %141, %144 : vector<8x1xf32>
    %cst_24 = arith.constant 0.000000e+00 : f32
    %146 = vector.broadcast %cst_24 : f32 to vector<8x1xf32>
    %147 = arith.select %143, %145, %146 : vector<8x1xi1>, vector<8x1xf32>
    %148 = vector.broadcast %147 : vector<8x1xf32> to vector<8x8xf32>
    %149 = vector.broadcast %132 : vector<1x8xf32> to vector<8x8xf32>
    %150 = arith.mulf %148, %149 : vector<8x8xf32>
    %151 = arith.subf %123, %150 : vector<8x8xf32>
    %152 = vector.extract_strided_slice %151 {offsets = [4, 0], sizes = [1, 8], strides = [1, 1]} : vector<8x8xf32> to vector<1x8xf32>
    %153 = vector.extract_strided_slice %152 {offsets = [0, 4], sizes = [1, 1], strides = [1, 1]} : vector<1x8xf32> to vector<1x1xf32>
    %154 = math.rsqrt %153 : vector<1x1xf32>
    %c4_i32 = arith.constant 4 : i32
    %155 = vector.broadcast %c4_i32 : i32 to vector<1x8xi32>
    %156 = arith.cmpi sgt, %36, %155 : vector<1x8xi32>
    %157 = vector.broadcast %154 : vector<1x1xf32> to vector<1x8xf32>
    %158 = arith.mulf %152, %157 : vector<1x8xf32>
    %cst_25 = arith.constant 0.000000e+00 : f32
    %159 = vector.broadcast %cst_25 : f32 to vector<1x8xf32>
    %160 = arith.select %156, %158, %159 : vector<1x8xi1>, vector<1x8xf32>
    %161 = vector.extract_strided_slice %137 {offsets = [0, 4], sizes = [1, 1], strides = [1, 1]} : vector<1x8xf32> to vector<1x1xf32>
    %162 = arith.mulf %161, %154 : vector<1x1xf32>
    %163 = vector.broadcast %162 : vector<1x1xf32> to vector<1x8xf32>
    %164 = arith.mulf %160, %163 : vector<1x8xf32>
    %165 = arith.subf %137, %164 : vector<1x8xf32>
    %166 = arith.mulf %162, %162 : vector<1x1xf32>
    %167 = arith.addf %139, %166 : vector<1x1xf32>
    %168 = arith.mulf %140, %153 : vector<1x1xf32>
    %169 = vector.extract_strided_slice %151 {offsets = [0, 4], sizes = [8, 1], strides = [1, 1]} : vector<8x8xf32> to vector<8x1xf32>
    %c4_i32_26 = arith.constant 4 : i32
    %170 = vector.broadcast %c4_i32_26 : i32 to vector<8x1xi32>
    %171 = arith.cmpi sgt, %37, %170 : vector<8x1xi32>
    %172 = vector.broadcast %154 : vector<1x1xf32> to vector<8x1xf32>
    %173 = arith.mulf %169, %172 : vector<8x1xf32>
    %cst_27 = arith.constant 0.000000e+00 : f32
    %174 = vector.broadcast %cst_27 : f32 to vector<8x1xf32>
    %175 = arith.select %171, %173, %174 : vector<8x1xi1>, vector<8x1xf32>
    %176 = vector.broadcast %175 : vector<8x1xf32> to vector<8x8xf32>
    %177 = vector.broadcast %160 : vector<1x8xf32> to vector<8x8xf32>
    %178 = arith.mulf %176, %177 : vector<8x8xf32>
    %179 = arith.subf %151, %178 : vector<8x8xf32>
    %180 = vector.extract_strided_slice %179 {offsets = [5, 0], sizes = [1, 8], strides = [1, 1]} : vector<8x8xf32> to vector<1x8xf32>
    %181 = vector.extract_strided_slice %180 {offsets = [0, 5], sizes = [1, 1], strides = [1, 1]} : vector<1x8xf32> to vector<1x1xf32>
    %182 = math.rsqrt %181 : vector<1x1xf32>
    %c5_i32 = arith.constant 5 : i32
    %183 = vector.broadcast %c5_i32 : i32 to vector<1x8xi32>
    %184 = arith.cmpi sgt, %36, %183 : vector<1x8xi32>
    %185 = vector.broadcast %182 : vector<1x1xf32> to vector<1x8xf32>
    %186 = arith.mulf %180, %185 : vector<1x8xf32>
    %cst_28 = arith.constant 0.000000e+00 : f32
    %187 = vector.broadcast %cst_28 : f32 to vector<1x8xf32>
    %188 = arith.select %184, %186, %187 : vector<1x8xi1>, vector<1x8xf32>
    %189 = vector.extract_strided_slice %165 {offsets = [0, 5], sizes = [1, 1], strides = [1, 1]} : vector<1x8xf32> to vector<1x1xf32>
    %190 = arith.mulf %189, %182 : vector<1x1xf32>
    %191 = vector.broadcast %190 : vector<1x1xf32> to vector<1x8xf32>
    %192 = arith.mulf %188, %191 : vector<1x8xf32>
    %193 = arith.subf %165, %192 : vector<1x8xf32>
    %194 = arith.mulf %190, %190 : vector<1x1xf32>
    %195 = arith.addf %167, %194 : vector<1x1xf32>
    %196 = arith.mulf %168, %181 : vector<1x1xf32>
    %197 = vector.extract_strided_slice %179 {offsets = [0, 5], sizes = [8, 1], strides = [1, 1]} : vector<8x8xf32> to vector<8x1xf32>
    %c5_i32_29 = arith.constant 5 : i32
    %198 = vector.broadcast %c5_i32_29 : i32 to vector<8x1xi32>
    %199 = arith.cmpi sgt, %37, %198 : vector<8x1xi32>
    %200 = vector.broadcast %182 : vector<1x1xf32> to vector<8x1xf32>
    %201 = arith.mulf %197, %200 : vector<8x1xf32>
    %cst_30 = arith.constant 0.000000e+00 : f32
    %202 = vector.broadcast %cst_30 : f32 to vector<8x1xf32>
    %203 = arith.select %199, %201, %202 : vector<8x1xi1>, vector<8x1xf32>
    %204 = vector.broadcast %203 : vector<8x1xf32> to vector<8x8xf32>
    %205 = vector.broadcast %188 : vector<1x8xf32> to vector<8x8xf32>
    %206 = arith.mulf %204, %205 : vector<8x8xf32>
    %207 = arith.subf %179, %206 : vector<8x8xf32>
    %208 = vector.extract_strided_slice %207 {offsets = [6, 0], sizes = [1, 8], strides = [1, 1]} : vector<8x8xf32> to vector<1x8xf32>
    %209 = vector.extract_strided_slice %208 {offsets = [0, 6], sizes = [1, 1], strides = [1, 1]} : vector<1x8xf32> to vector<1x1xf32>
    %210 = math.rsqrt %209 : vector<1x1xf32>
    %c6_i32 = arith.constant 6 : i32
    %211 = vector.broadcast %c6_i32 : i32 to vector<1x8xi32>
    %212 = arith.cmpi sgt, %36, %211 : vector<1x8xi32>
    %213 = vector.broadcast %210 : vector<1x1xf32> to vector<1x8xf32>
    %214 = arith.mulf %208, %213 : vector<1x8xf32>
    %cst_31 = arith.constant 0.000000e+00 : f32
    %215 = vector.broadcast %cst_31 : f32 to vector<1x8xf32>
    %216 = arith.select %212, %214, %215 : vector<1x8xi1>, vector<1x8xf32>
    %217 = vector.extract_strided_slice %193 {offsets = [0, 6], sizes = [1, 1], strides = [1, 1]} : vector<1x8xf32> to vector<1x1xf32>
    %218 = arith.mulf %217, %210 : vector<1x1xf32>
    %219 = vector.broadcast %218 : vector<1x1xf32> to vector<1x8xf32>
    %220 = arith.mulf %216, %219 : vector<1x8xf32>
    %221 = arith.subf %193, %220 : vector<1x8xf32>
    %222 = arith.mulf %218, %218 : vector<1x1xf32>
    %223 = arith.addf %195, %222 : vector<1x1xf32>
    %224 = arith.mulf %196, %209 : vector<1x1xf32>
    %225 = vector.extract_strided_slice %207 {offsets = [0, 6], sizes = [8, 1], strides = [1, 1]} : vector<8x8xf32> to vector<8x1xf32>
    %c6_i32_32 = arith.constant 6 : i32
    %226 = vector.broadcast %c6_i32_32 : i32 to vector<8x1xi32>
    %227 = arith.cmpi sgt, %37, %226 : vector<8x1xi32>
    %228 = vector.broadcast %210 : vector<1x1xf32> to vector<8x1xf32>
    %229 = arith.mulf %225, %228 : vector<8x1xf32>
    %cst_33 = arith.constant 0.000000e+00 : f32
    %230 = vector.broadcast %cst_33 : f32 to vector<8x1xf32>
    %231 = arith.select %227, %229, %230 : vector<8x1xi1>, vector<8x1xf32>
    %232 = vector.broadcast %231 : vector<8x1xf32> to vector<8x8xf32>
    %233 = vector.broadcast %216 : vector<1x8xf32> to vector<8x8xf32>
    %234 = arith.mulf %232, %233 : vector<8x8xf32>
    %235 = arith.subf %207, %234 : vector<8x8xf32>
    %236 = vector.extract_strided_slice %235 {offsets = [7, 0], sizes = [1, 8], strides = [1, 1]} : vector<8x8xf32> to vector<1x8xf32>
    %237 = vector.extract_strided_slice %236 {offsets = [0, 7], sizes = [1, 1], strides = [1, 1]} : vector<1x8xf32> to vector<1x1xf32>
    %238 = math.rsqrt %237 : vector<1x1xf32>
    %239 = vector.extract_strided_slice %221 {offsets = [0, 7], sizes = [1, 1], strides = [1, 1]} : vector<1x8xf32> to vector<1x1xf32>
    %240 = arith.mulf %239, %238 : vector<1x1xf32>
    %241 = arith.mulf %240, %240 : vector<1x1xf32>
    %242 = arith.addf %223, %241 : vector<1x1xf32>
    %243 = arith.mulf %224, %237 : vector<1x1xf32>
    %244 = math.log %243 : vector<1x1xf32>
    %245 = arith.addf %242, %244 : vector<1x1xf32>
    %cst_34 = arith.constant 5.000000e-01 : f32
    %246 = vector.broadcast %cst_34 : f32 to vector<1x1xf32>
    %247 = arith.mulf %246, %245 : vector<1x1xf32>
    %c0_35 = arith.constant 0 : index
    %c0_36 = arith.constant 0 : index
    %248 = vector.load %arg1[%c0_35, %c0_36] : memref<1x1xf32, #tpu.memory_space<vmem>>, vector<1x1xf32>
    tpu.vector_store %arg1[%c0_35, %c0_36], %247 {strides = array<i32>} : memref<1x1xf32, #tpu.memory_space<vmem>>, vector<1x1xf32>,
    return
  }
}

</mosaic_0001>

<llo_original>
// kernel: tpu_custom_call.1
$region0: #{tpu_custom_call.1}
  #allocation0 [shape = 'u32[]', space=smem, size = 0x4, offset = 0x4, fixed_abs, tag = 'smem constant byte address 0x4 - core index']
  #allocation1 [shape = 'u32[72,128]{1,0:T(1,128)}', space=vmem, size = 0x9000, scoped, tag = 'internal scratch']
  %s0 = inlined_call_operand.hbm [shape: f32[16,128], index: 0, kind: input, shape index: {}]
  %s1 = inlined_call_operand.hbm [shape: f32[1,1], index: 1, kind: output, shape index: {}]
  %s2 = sld [smem:[#allocation0]]
  $region18: #{tpu_custom_call.1} parent=0
    _
  %s4 = ssub.s32 1, %s2
  %s5 = scalar_select 0, %s4, %s2
  $region1: #{tpu_custom_call.1} parent=0
    #allocation2 [shape = 'u8[8192]{0}', space=vmem, size = 0x2000, scoped, tag = 'input window, operand 0, single buffered']
    #allocation3 [shape = 's32[1]{0}', space=sflag, size = 0x4, scoped, tag = 'scoped memory for tpu_custom_call.1']
    #allocation4 [shape = 's32[1]{0}', space=sflag, size = 0x4, scoped, tag = 'scoped memory for tpu_custom_call.1']
    #allocation5 [shape = 'u8[512]{0}', space=vmem, size = 0x400, scoped, tag = 'output window, operand 0, single buffered']
    %6 = vsyncpa [#allocation3], 0
    %7 = vsyncpa [#allocation4], 0
    // Predicated region
    $region2: #{tpu_custom_call.1} parent=1 // pred_check
      _
    $region3: #{tpu_custom_call.1} parent=1 // pred_check_branch
      %9 = sbr.rel (0) target = $region5
    $region4: #{tpu_custom_call.1} parent=1 // pred_region
      %11 = vsyncadd [#allocation3], 0
      %s12 = sshll.u32 %s0, 4
      %s13 = int_to_ptr.hbm [resolvable:$true] %s12
      %s14 = sshll.u32 [#allocation2], 4
      %s15 = int_to_ptr.vmem [resolvable:$true] %s14
      %20 = dma.hbm_to_vmem [thread:$0]  %s13, 256, %s15, [#allocation3], 128, 128, 8
    $region5: #{tpu_custom_call.1} parent=1 // pred_fallthru
      _
    // Predicated region
    $region6: #{tpu_custom_call.1} parent=1 // pred_check
      _
    $region7: #{tpu_custom_call.1} parent=1 // pred_check_branch
      %22 = sbr.rel (0) target = $region9
    $region8: #{tpu_custom_call.1} parent=1 // pred_region
      %24 = dma.done [#allocation3], 256
    $region9: #{tpu_custom_call.1} parent=1 // pred_fallthru
      _
    %v25 = vld [vmem:[#allocation2] sm:$0xff]
    %v26 = vld [vmem:[#allocation2 + $0x8] sm:$0x1]
    %v27 = vld [vmem:[#allocation2 + $0x9] sm:$0x1]
    %v28 = vld [vmem:[#allocation2 + $0xa] sm:$0x1]
    %v29 = vld [vmem:[#allocation2 + $0xb] sm:$0x1]
    %31 = vset.pattern.permute.xlu0 0
    %32 = vperm.xlu0 %31, %v25
    %v33 = vpop.permute.xlu0 %32
    %v35 = vperm.slane %v27, 0
    %v36 = vmul.f32 %v33, %v35
    %37 = vset.pattern.permute.xlu0 1
    %38 = vperm.xlu0 %37, %v25
    %v39 = vpop.permute.xlu0 %38
    %v41 = vperm.slane %v28, 0
    %v42 = vmul.f32 %v39, %v41
    %v43 = vadd.f32 %v36, %v42
    %v44 = vperm.slane %v29, 0
    %v45 = vadd.f32 %v43, %v44
    %vm46 = vcmask 261120
    %v48 = vsel %vm46, %v45, 0
    %50 = vmatpush.xpose.msra.mxu0 0.0
    %51 = vmatpush.xpose.msra.mxu0 0.0
    %52 = vmatpush.xpose.msra.mxu0 0.0
    %53 = vmatpush.xpose.msra.mxu0 0.0
    %54 = vmatpush.xpose.msra.mxu0 0.0
    %55 = vmatpush.xpose.msra.mxu0 0.0
    %56 = vmatpush.xpose.msra.mxu0 0.0
    %57 = vmatpush.xpose.msra.mxu0 0.0
    %58 = vmatpush.xpose.msra.mxu0 0.0
    %59 = vmatpush.xpose.msra.mxu0 0.0
    %60 = vmatpush.xpose.msra.mxu0 0.0
    %61 = vmatpush.xpose.msra.mxu0 0.0
    %62 = vmatpush.xpose.msra.mxu0 0.0
    %63 = vmatpush.xpose.msra.mxu0 0.0
    %64 = vmatpush.xpose.msra.mxu0 0.0
    %65 = vmatpush.xpose.msra.mxu0 %v48
    %66 = vmatmul.f32.gmra.mxu0 %v48
    %v67 = vpop.f32.mrf.mxu0
    %v68 = vadd.f32 0.0, %v67
    %69 = vdwg.mxu0
    %v70 = vmul.f32 %v45, %v45
    %v71 = vsel %vm46, %v70, 0.0
    %72 = vadd.xlane.f32.xlu0 %v71
    %v73 = vpop.xlane.xlu0 %72
    %74 = vxpose.xlu0.b32.start [1/16] %v73, 128
    %75 = vxpose.xlu0.b32.cont [2/16] 0.0, 128
    %76 = vxpose.xlu0.b32.cont [3/16] 0.0, 128
    %77 = vxpose.xlu0.b32.cont [4/16] 0.0, 128
    %78 = vxpose.xlu0.b32.cont [5/16] 0.0, 128
    %79 = vxpose.xlu0.b32.cont [6/16] 0.0, 128
    %80 = vxpose.xlu0.b32.cont [7/16] 0.0, 128
    %81 = vxpose.xlu0.b32.cont [8/16] 0.0, 128
    %82 = vxpose.xlu0.b32.cont [9/16] 0.0, 128
    %83 = vxpose.xlu0.b32.cont [10/16] 0.0, 128
    %84 = vxpose.xlu0.b32.cont [11/16] 0.0, 128
    %85 = vxpose.xlu0.b32.cont [12/16] 0.0, 128
    %86 = vxpose.xlu0.b32.cont [13/16] 0.0, 128
    %87 = vxpose.xlu0.b32.cont [14/16] 0.0, 128
    %88 = vxpose.xlu0.b32.cont [15/16] 0.0, 128
    %89 = vxpose.xlu0.b32.end [16/16] 0.0, 128
    %v90 = vpop.trf.xlu0
    %v91 = vpop.trf.xlu0
    %v92 = vpop.trf.xlu0
    %v93 = vpop.trf.xlu0
    %v94 = vpop.trf.xlu0
    %v95 = vpop.trf.xlu0
    %v96 = vpop.trf.xlu0
    %v97 = vpop.trf.xlu0
    %v98 = vpop.trf.xlu0
    %v99 = vpop.trf.xlu0
    %v100 = vpop.trf.xlu0
    %v101 = vpop.trf.xlu0
    %v102 = vpop.trf.xlu0
    %v103 = vpop.trf.xlu0
    %v104 = vpop.trf.xlu0
    %v105 = vpop.trf.xlu0
    %v106 = vperm.slane %v90, 0
    %v107 = vadd.f32 %v73, %v106
    %v108 = vmul.f32 %v68, 2.0
    %v109 = vsub.f32 %v107, %v108
    %v110 = vmax.f32 %v109, 0.0
    %v111 = vmul.f32 %v110, -2.0
    %v112 = vmul.f32 %v111, 1.442695
    %v113 = vpow.pop %v112
    %v114 = vlaneseq
    %v115 = vshrl.u32 %v114, 7
    %v116 = vlaneseq
    %v117 = vand.u32 %v116, 127
    %vm118 = vcmp.eq.s32.totalorder %v115, %v117
    %v119 = vsel %vm118, 1.1, %v113
    %v120 = vrsqrt.pop %v119
    %v121 = vmul.f32 %v120, %v119
    %v122 = vmul.f32 %v121, %v120
    %v123 = vmul.f32 0.5, %v122
    %v124 = vsub.f32 1.5, %v123
    %v125 = vmul.f32 %v120, %v124
    %vm126 = vweird.f32 %v119
    %vm127 = vweird.f32 %v120
    %vm128 = vmor %vm126, %vm127
    %v129 = vsel %vm128, %v120, %v125
    %vm130 = vcmp.gt.s32.totalorder %v117, 0
    %132 = vset.pattern.permute.xlu0 0
    %133 = vperm.xlu0 %132, %v129
    %v134 = vpop.permute.xlu0 %133
    %v136 = vmul.f32 %v119, %v134
    %v137 = vsel %vm130, %v136, 0.0
    %v138 = vmul.f32 %v26, %v129
    %140 = vset.pattern.permute.xlu0 0
    %141 = vperm.xlu0 %140, %v138
    %v142 = vpop.permute.xlu0 %141
    %v144 = vmul.f32 %v137, %v142
    %v145 = vsub.f32 %v26, %v144
    %v146 = vmul.f32 %v138, %v138
    %v147 = vadd.f32 %v146, 0.0
    %vm148 = vcmp.gt.s32.totalorder %v115, 0
    %v149 = vperm.slane %v129, 0
    %v150 = vmul.f32 %v119, %v149
    %v151 = vsel %vm148, %v150, 0.0
    %153 = vset.pattern.permute.xlu0 0
    %154 = vperm.xlu0 %153, %v151
    %v155 = vpop.permute.xlu0 %154
    %v157 = vperm.slane %v137, 0
    %v158 = vmul.f32 %v155, %v157
    %v159 = vsub.f32 %v119, %v158
    %v160 = vrsqrt.pop %v159
    %v161 = vmul.f32 %v160, %v159
    %v162 = vmul.f32 %v161, %v160
    %v163 = vmul.f32 0.5, %v162
    %v164 = vsub.f32 1.5, %v163
    %v165 = vmul.f32 %v160, %v164
    %vm166 = vweird.f32 %v159
    %vm167 = vweird.f32 %v160
    %vm168 = vmor %vm166, %vm167
    %v169 = vsel %vm168, %v160, %v165
    %vm170 = vcmp.gt.s32.totalorder %v117, 1
    %172 = vset.pattern.permute.xlu0 1
    %173 = vperm.xlu0 %172, %v169
    %v174 = vpop.permute.xlu0 %173
    %v176 = vmul.f32 %v159, %v174
    %v177 = vsel %vm170, %v176, 0.0
    %v178 = vrot.slane %v169, 1
    %v180 = vmul.f32 %v145, %v178
    %182 = vset.pattern.permute.xlu0 1
    %183 = vperm.xlu0 %182, %v180
    %v184 = vpop.permute.xlu0 %183
    %v185 = vrot.slane %v184, 7
    %v187 = vmul.f32 %v177, %v185
    %v189 = vrot.slane %v187, 1
    %v191 = vsub.f32 %v145, %v189
    %v192 = vmul.f32 %v180, %v180
    %194 = vrot.lane.b32.xlu0 %v192, 127
    %v195 = vpop.permute.xlu0 %194
    %v197 = vadd.f32 %v147, %v195
    %v199 = vrot.slane %v159, 1
    %200 = vrot.lane.b32.xlu0 %v199, 127
    %v201 = vpop.permute.xlu0 %200
    %v203 = vmul.f32 %v119, %v201
    %vm204 = vcmp.gt.s32.totalorder %v115, 1
    %v205 = vperm.slane %v169, 1
    %v206 = vmul.f32 %v159, %v205
    %v207 = vsel %vm204, %v206, 0.0
    %209 = vset.pattern.permute.xlu0 1
    %210 = vperm.xlu0 %209, %v207
    %v211 = vpop.permute.xlu0 %210
    %v213 = vperm.slane %v177, 1
    %v214 = vmul.f32 %v211, %v213
    %v215 = vsub.f32 %v159, %v214
    %v216 = vrsqrt.pop %v215
    %v217 = vmul.f32 %v216, %v215
    %v218 = vmul.f32 %v217, %v216
    %v219 = vmul.f32 0.5, %v218
    %v220 = vsub.f32 1.5, %v219
    %v221 = vmul.f32 %v216, %v220
    %vm222 = vweird.f32 %v215
    %vm223 = vweird.f32 %v216
    %vm224 = vmor %vm222, %vm223
    %v225 = vsel %vm224, %v216, %v221
    %vm226 = vcmp.gt.s32.totalorder %v117, 2
    %228 = vset.pattern.permute.xlu0 2
    %229 = vperm.xlu0 %228, %v225
    %v230 = vpop.permute.xlu0 %229
    %v232 = vmul.f32 %v215, %v230
    %v233 = vsel %vm226, %v232, 0.0
    %v234 = vrot.slane %v225, 2
    %v236 = vmul.f32 %v191, %v234
    %238 = vset.pattern.permute.xlu0 2
    %239 = vperm.xlu0 %238, %v236
    %v240 = vpop.permute.xlu0 %239
    %v241 = vrot.slane %v240, 6
    %v243 = vmul.f32 %v233, %v241
    %v245 = vrot.slane %v243, 2
    %v247 = vsub.f32 %v191, %v245
    %v248 = vmul.f32 %v236, %v236
    %250 = vrot.lane.b32.xlu0 %v248, 126
    %v251 = vpop.permute.xlu0 %250
    %v253 = vadd.f32 %v197, %v251
    %v255 = vrot.slane %v215, 2
    %256 = vrot.lane.b32.xlu0 %v255, 126
    %v257 = vpop.permute.xlu0 %256
    %v259 = vmul.f32 %v203, %v257
    %vm260 = vcmp.gt.s32.totalorder %v115, 2
    %v261 = vperm.slane %v225, 2
    %v262 = vmul.f32 %v215, %v261
    %v263 = vsel %vm260, %v262, 0.0
    %265 = vset.pattern.permute.xlu0 2
    %266 = vperm.xlu0 %265, %v263
    %v267 = vpop.permute.xlu0 %266
    %v269 = vperm.slane %v233, 2
    %v270 = vmul.f32 %v267, %v269
    %v271 = vsub.f32 %v215, %v270
    %v272 = vrsqrt.pop %v271
    %v273 = vmul.f32 %v272, %v271
    %v274 = vmul.f32 %v273, %v272
    %v275 = vmul.f32 0.5, %v274
    %v276 = vsub.f32 1.5, %v275
    %v277 = vmul.f32 %v272, %v276
    %vm278 = vweird.f32 %v271
    %vm279 = vweird.f32 %v272
    %vm280 = vmor %vm278, %vm279
    %v281 = vsel %vm280, %v272, %v277
    %vm282 = vcmp.gt.s32.totalorder %v117, 3
    %284 = vset.pattern.permute.xlu0 3
    %285 = vperm.xlu0 %284, %v281
    %v286 = vpop.permute.xlu0 %285
    %v288 = vmul.f32 %v271, %v286
    %v289 = vsel %vm282, %v288, 0.0
    %v290 = vrot.slane %v281, 3
    %v292 = vmul.f32 %v247, %v290
    %294 = vset.pattern.permute.xlu0 3
    %295 = vperm.xlu0 %294, %v292
    %v296 = vpop.permute.xlu0 %295
    %v297 = vrot.slane %v296, 5
    %v299 = vmul.f32 %v289, %v297
    %v301 = vrot.slane %v299, 3
    %v303 = vsub.f32 %v247, %v301
    %v304 = vmul.f32 %v292, %v292
    %306 = vrot.lane.b32.xlu0 %v304, 125
    %v307 = vpop.permute.xlu0 %306
    %v309 = vadd.f32 %v253, %v307
    %v311 = vrot.slane %v271, 3
    %312 = vrot.lane.b32.xlu0 %v311, 125
    %v313 = vpop.permute.xlu0 %312
    %v315 = vmul.f32 %v259, %v313
    %vm316 = vcmp.gt.s32.totalorder %v115, 3
    %v317 = vperm.slane %v281, 3
    %v318 = vmul.f32 %v271, %v317
    %v319 = vsel %vm316, %v318, 0.0
    %321 = vset.pattern.permute.xlu0 3
    %322 = vperm.xlu0 %321, %v319
    %v323 = vpop.permute.xlu0 %322
    %v325 = vperm.slane %v289, 3
    %v326 = vmul.f32 %v323, %v325
    %v327 = vsub.f32 %v271, %v326
    %v328 = vrsqrt.pop %v327
    %v329 = vmul.f32 %v328, %v327
    %v330 = vmul.f32 %v329, %v328
    %v331 = vmul.f32 0.5, %v330
    %v332 = vsub.f32 1.5, %v331
    %v333 = vmul.f32 %v328, %v332
    %vm334 = vweird.f32 %v327
    %vm335 = vweird.f32 %v328
    %vm336 = vmor %vm334, %vm335
    %v337 = vsel %vm336, %v328, %v333
    %vm338 = vcmp.gt.s32.totalorder %v117, 4
    %340 = vset.pattern.permute.xlu0 4
    %341 = vperm.xlu0 %340, %v337
    %v342 = vpop.permute.xlu0 %341
    %v344 = vmul.f32 %v327, %v342
    %v345 = vsel %vm338, %v344, 0.0
    %v346 = vrot.slane %v337, 4
    %v348 = vmul.f32 %v303, %v346
    %350 = vset.pattern.permute.xlu0 4
    %351 = vperm.xlu0 %350, %v348
    %v352 = vpop.permute.xlu0 %351
    %v353 = vrot.slane %v352, 4
    %v355 = vmul.f32 %v345, %v353
    %v357 = vrot.slane %v355, 4
    %v359 = vsub.f32 %v303, %v357
    %v360 = vmul.f32 %v348, %v348
    %362 = vrot.lane.b32.xlu0 %v360, 124
    %v363 = vpop.permute.xlu0 %362
    %v365 = vadd.f32 %v309, %v363
    %v367 = vrot.slane %v327, 4
    %368 = vrot.lane.b32.xlu0 %v367, 124
    %v369 = vpop.permute.xlu0 %368
    %v371 = vmul.f32 %v315, %v369
    %vm372 = vcmp.gt.s32.totalorder %v115, 4
    %v373 = vperm.slane %v337, 4
    %v374 = vmul.f32 %v327, %v373
    %v375 = vsel %vm372, %v374, 0.0
    %377 = vset.pattern.permute.xlu0 4
    %378 = vperm.xlu0 %377, %v375
    %v379 = vpop.permute.xlu0 %378
    %v381 = vperm.slane %v345, 4
    %v382 = vmul.f32 %v379, %v381
    %v383 = vsub.f32 %v327, %v382
    %v384 = vrsqrt.pop %v383
    %v385 = vmul.f32 %v384, %v383
    %v386 = vmul.f32 %v385, %v384
    %v387 = vmul.f32 0.5, %v386
    %v388 = vsub.f32 1.5, %v387
    %v389 = vmul.f32 %v384, %v388
    %vm390 = vweird.f32 %v383
    %vm391 = vweird.f32 %v384
    %vm392 = vmor %vm390, %vm391
    %v393 = vsel %vm392, %v384, %v389
    %vm394 = vcmp.gt.s32.totalorder %v117, 5
    %396 = vset.pattern.permute.xlu0 5
    %397 = vperm.xlu0 %396, %v393
    %v398 = vpop.permute.xlu0 %397
    %v400 = vmul.f32 %v383, %v398
    %v401 = vsel %vm394, %v400, 0.0
    %v402 = vrot.slane %v393, 5
    %v404 = vmul.f32 %v359, %v402
    %406 = vset.pattern.permute.xlu0 5
    %407 = vperm.xlu0 %406, %v404
    %v408 = vpop.permute.xlu0 %407
    %v409 = vrot.slane %v408, 3
    %v411 = vmul.f32 %v401, %v409
    %v413 = vrot.slane %v411, 5
    %v415 = vsub.f32 %v359, %v413
    %v416 = vmul.f32 %v404, %v404
    %418 = vrot.lane.b32.xlu0 %v416, 123
    %v419 = vpop.permute.xlu0 %418
    %v421 = vadd.f32 %v365, %v419
    %v423 = vrot.slane %v383, 5
    %424 = vrot.lane.b32.xlu0 %v423, 123
    %v425 = vpop.permute.xlu0 %424
    %v427 = vmul.f32 %v371, %v425
    %vm428 = vcmp.gt.s32.totalorder %v115, 5
    %v429 = vperm.slane %v393, 5
    %v430 = vmul.f32 %v383, %v429
    %v431 = vsel %vm428, %v430, 0.0
    %433 = vset.pattern.permute.xlu0 5
    %434 = vperm.xlu0 %433, %v431
    %v435 = vpop.permute.xlu0 %434
    %v437 = vperm.slane %v401, 5
    %v438 = vmul.f32 %v435, %v437
    %v439 = vsub.f32 %v383, %v438
    %v440 = vrsqrt.pop %v439
    %v441 = vmul.f32 %v440, %v439
    %v442 = vmul.f32 %v441, %v440
    %v443 = vmul.f32 0.5, %v442
    %v444 = vsub.f32 1.5, %v443
    %v445 = vmul.f32 %v440, %v444
    %vm446 = vweird.f32 %v439
    %vm447 = vweird.f32 %v440
    %vm448 = vmor %vm446, %vm447
    %v449 = vsel %vm448, %v440, %v445
    %vm450 = vcmp.gt.s32.totalorder %v117, 6
    %452 = vset.pattern.permute.xlu0 6
    %453 = vperm.xlu0 %452, %v449
    %v454 = vpop.permute.xlu0 %453
    %v456 = vmul.f32 %v439, %v454
    %v457 = vsel %vm450, %v456, 0.0
    %v458 = vrot.slane %v449, 6
    %v460 = vmul.f32 %v415, %v458
    %462 = vset.pattern.permute.xlu0 6
    %463 = vperm.xlu0 %462, %v460
    %v464 = vpop.permute.xlu0 %463
    %v465 = vrot.slane %v464, 2
    %v467 = vmul.f32 %v457, %v465
    %v469 = vrot.slane %v467, 6
    %v471 = vsub.f32 %v415, %v469
    %v472 = vmul.f32 %v460, %v460
    %474 = vrot.lane.b32.xlu0 %v472, 122
    %v475 = vpop.permute.xlu0 %474
    %v477 = vadd.f32 %v421, %v475
    %v479 = vrot.slane %v439, 6
    %480 = vrot.lane.b32.xlu0 %v479, 122
    %v481 = vpop.permute.xlu0 %480
    %v483 = vmul.f32 %v427, %v481
    %vm484 = vcmp.gt.s32.totalorder %v115, 6
    %v485 = vperm.slane %v449, 6
    %v486 = vmul.f32 %v439, %v485
    %v487 = vsel %vm484, %v486, 0.0
    %489 = vset.pattern.permute.xlu0 6
    %490 = vperm.xlu0 %489, %v487
    %v491 = vpop.permute.xlu0 %490
    %v493 = vperm.slane %v457, 6
    %v494 = vmul.f32 %v491, %v493
    %v495 = vsub.f32 %v439, %v494
    %v496 = vrsqrt.pop %v495
    %v497 = vmul.f32 %v496, %v495
    %v498 = vmul.f32 %v497, %v496
    %v499 = vmul.f32 0.5, %v498
    %v500 = vsub.f32 1.5, %v499
    %v501 = vmul.f32 %v496, %v500
    %vm502 = vweird.f32 %v495
    %vm503 = vweird.f32 %v496
    %vm504 = vmor %vm502, %vm503
    %v505 = vsel %vm504, %v496, %v501
    %v507 = vrot.slane %v505, 7
    %v509 = vmul.f32 %v471, %v507
    %v510 = vmul.f32 %v509, %v509
    %512 = vrot.lane.b32.xlu0 %v510, 121
    %v513 = vpop.permute.xlu0 %512
    %v515 = vadd.f32 %v477, %v513
    %v517 = vrot.slane %v495, 7
    %518 = vrot.lane.b32.xlu0 %v517, 121
    %v519 = vpop.permute.xlu0 %518
    %v521 = vmul.f32 %v483, %v519
    %v522 = vlog2.pop %v521
    %v523 = vmul.f32 %v522, 0.6931472
    %v524 = vadd.f32 %v515, %v523
    %v525 = vmul.f32 %v524, 0.5
    %vm526 = vcmask 0
    %527 = vst.msk [vmem:[#allocation5] sm:$0x1] %vm526, %v525
    // Predicated region
    $region10: #{tpu_custom_call.1} parent=1 // pred_check
      _
    $region11: #{tpu_custom_call.1} parent=1 // pred_check_branch
      %529 = sbr.rel (0) target = $region13
    $region12: #{tpu_custom_call.1} parent=1 // pred_region
      %531 = vsyncadd [#allocation4], 0
      %s533 = sshll.u32 [#allocation5], 4
      %s534 = int_to_ptr.vmem [resolvable:$true] %s533
      %s535 = sshll.u32 %s1, 4
      %s536 = int_to_ptr.hbm [resolvable:$true] %s535
      %538 = dma.vmem_to_hbm [thread:$0]  %s534, 16, %s536, [#allocation4]
    $region13: #{tpu_custom_call.1} parent=1 // pred_fallthru
      _
    // Predicated region
    $region14: #{tpu_custom_call.1} parent=1 // pred_check
      _
    $region15: #{tpu_custom_call.1} parent=1 // pred_check_branch
      %540 = sbr.rel (0) target = $region17
    $region16: #{tpu_custom_call.1} parent=1 // pred_region
      %542 = dma.done [#allocation4], 16
    $region17: #{tpu_custom_call.1} parent=1 // pred_fallthru
      _
    %543 = vsyncpa [#allocation3], 1
    %544 = vsyncpa [#allocation4], 1

</llo_original>
